<compile_context>
chip_gen: v5e
topology: v5e:2x2
jax: 0.10.0
libtpu: 0.0.40
codegen_flags: <defaults>
</compile_context>

<pallas_src>
from functools import partial

import jax
import jax.numpy as jnp
from jax.experimental import pallas as pl
from jax.experimental.pallas import tpu as pltpu


def _round_up(x, m):
    return ((x + m - 1) // m) * m


def _default_hidden_dtype():
    """bf16 elementwise on bf16-capable VPUs (v6e/v7x); f32 on v5e and older."""
    try:
        kind = jax.devices()[0].device_kind.lower()
    except Exception:
        return jnp.float32
    for old in ("v2", "v3", "v4", "v5"):
        if old in kind:
            return jnp.float32
    return jnp.bfloat16


def _mlp_kernel(xT_ref, w1T_ref, b1_ref, w2T_ref, b2_ref, w3_ref, b3_ref, o_ref,
                *, hidden_dtype):
    """Fused 2-hidden-layer MLP in batch-in-lanes layout.

    xT_ref : (D,  bb)  bf16   activations, batch on the lane axis
    w1T_ref: (H1, D)   bf16
    b1_ref : (H1, 1)   hidden_dtype
    w2T_ref: (H2, H1)  bf16
    b2_ref : (H2, 1)   hidden_dtype
    w3_ref : (H2, 1)   f32    output-head weights
    b3_ref : (1, 1)    f32    output-head bias (SMEM scalar)
    o_ref  : (1,  bb)  f32    lane-dense output row
    """
    # Layer 1: (H1, D) @ (D, bb) on the MXU, f32 accumulate.
    h = jnp.dot(w1T_ref[...], xT_ref[...], preferred_element_type=jnp.float32)
    # Bias + ReLU in hidden_dtype (bf16 on v6e/v7x, f32 on v5e). Dropout = id.
    h = jnp.maximum(h.astype(hidden_dtype) + b1_ref[...], 0)

    # Layer 2: (H2, H1) @ (H1, bb), f32 accumulate.
    h = jnp.dot(w2T_ref[...], h.astype(w2T_ref.dtype),
                preferred_element_type=jnp.float32)
    h = jnp.maximum(h.astype(hidden_dtype) + b2_ref[...], 0)

    # Output head (H2 -> 1): VPU multiply + sublane reduce (no N=1 MXU matmul),
    # directly producing a lane-dense (1, bb) row. Head math in f32.
    o = jnp.sum(h.astype(jnp.float32) * w3_ref[...], axis=0, keepdims=True)
    o_ref[...] = (o + b3_ref[0, 0]).astype(o_ref.dtype)


def mlp_forward(x, params, *, block_batch=1024, hidden_dtype=None,
                vmem_limit_bytes=None):
    """Run the fused MLP Pallas kernel.

    x:       (B, input_dim) float32
    params:  dict with w1 (D,H1), b1 (1,H1), w2 (H1,H2), b2 (1,H2),
             w3 (H2,1), b3 (1,1)
    block_batch: batch rows per grid step (multiple of 128; sweep 512-2048).
             It is automatically capped so the grid has >= 2 steps when B > 128
             (keeps both v7x TensorCores busy).
    hidden_dtype: dtype for bias-add/ReLU (None -> bf16 on v6e/v7x, f32 on v5e).
    returns: (B,) float32   (squeeze(-1) applied in the wrapper)
    """
    B, D = x.shape
    H1 = params["w1"].shape[1]
    H2 = params["w2"].shape[1]

    if hidden_dtype is None:
        hidden_dtype = _default_hidden_dtype()

    # Block size: multiple of 128, capped so there are >= 2 grid steps when
    # possible (v7x has 2 TensorCores; "parallel" shards the batch grid).
    bb = _round_up(max(128, min(block_batch, _round_up((B + 1) // 2, 128))), 128)
    num_blocks = pl.cdiv(B, bb)
    Bp = num_blocks * bb

    # Batch-in-lanes: xT (D, Bp) bf16. Transpose + bf16 cast + lane-pad fuse
    # into a single XLA pass over x; pad rows are discarded below.
    xT = x.T.astype(jnp.bfloat16)
    if Bp != B:
        xT = jnp.pad(xT, ((0, 0), (0, Bp - B)))

    # Transposed bf16 weights for the MXU; biases in hidden_dtype as column
    # tiles (broadcast over lanes); head weights/bias in f32.
    w1T = params["w1"].T.astype(jnp.bfloat16)                      # (H1, D)
    w2T = params["w2"].T.astype(jnp.bfloat16)                      # (H2, H1)
    b1 = params["b1"].reshape(H1, 1).astype(hidden_dtype)          # (H1, 1)
    b2 = params["b2"].reshape(H2, 1).astype(hidden_dtype)          # (H2, 1)
    w3 = params["w3"].reshape(H2, 1).astype(jnp.float32)           # (H2, 1)
    b3 = params["b3"].reshape(1, 1).astype(jnp.float32)            # SMEM scalar

    out = pl.pallas_call(
        partial(_mlp_kernel, hidden_dtype=hidden_dtype),
        # Lane-dense output: one (1, bb) slice of a (1, Bp) row per grid step;
        # the block spans the full second-minor dim (no partial-tile writeback).
        out_shape=jax.ShapeDtypeStruct((1, Bp), jnp.float32),
        grid_spec=pltpu.PrefetchScalarGridSpec(
            num_scalar_prefetch=0,
            grid=(num_blocks,),
            in_specs=[
                # activations: tiled along the lane (batch) axis
                pl.BlockSpec((D, bb), lambda i: (0, i)),
                # weights / biases: whole array, same block every step
                pl.BlockSpec((H1, D), lambda i: (0, 0)),
                pl.BlockSpec((H1, 1), lambda i: (0, 0)),
                pl.BlockSpec((H2, H1), lambda i: (0, 0)),
                pl.BlockSpec((H2, 1), lambda i: (0, 0)),
                pl.BlockSpec((H2, 1), lambda i: (0, 0)),
                # scalar output bias lives in SMEM (no padded VMEM tile)
                pl.BlockSpec(memory_space=pltpu.MemorySpace.SMEM),
            ],
            out_specs=pl.BlockSpec((1, bb), lambda i: (0, i)),
        ),
        compiler_params=pltpu.CompilerParams(
            dimension_semantics=("parallel",),
            vmem_limit_bytes=vmem_limit_bytes,
        ),
    )(xT, w1T, b1, w2T, b2, w3, b3)

    return out.reshape(Bp)[:B]  # undo lane padding; squeeze(-1)


def init_params(key, input_dim, hidden_dims):
    """Deterministic init mimicking nn.Linear default (U[-1/sqrt(fan_in), ..])."""
    dims = [input_dim] + hidden_dims + [1]
    params = {}
    for li in range(len(dims) - 1):
        fan_in, fan_out = dims[li], dims[li + 1]
        key, kw, kb = jax.random.split(key, 3)
        bound = 1.0 / jnp.sqrt(fan_in)
        w = jax.random.uniform(kw, (fan_in, fan_out), jnp.float32, -bound, bound)
        b = jax.random.uniform(kb, (1, fan_out), jnp.float32, -bound, bound)
        params[f"w{li + 1}"] = w
        params[f"b{li + 1}"] = b
    return params


def mlp_reference(x, params, hidden_dtype=jnp.float32):
    """Pure-JAX reference mirroring the kernel's dtype recipe."""
    xb = x.astype(jnp.bfloat16)
    w1 = params["w1"].astype(jnp.bfloat16)
    w2 = params["w2"].astype(jnp.bfloat16)
    h = jnp.dot(xb, w1, preferred_element_type=jnp.float32)
    h = jnp.maximum(h.astype(hidden_dtype) + params["b1"].astype(hidden_dtype), 0)
    h = jnp.dot(h.astype(jnp.bfloat16), w2, preferred_element_type=jnp.float32)
    h = jnp.maximum(h.astype(hidden_dtype) + params["b2"].astype(hidden_dtype), 0)
    o = jnp.sum(h.astype(jnp.float32) * params["w3"].reshape(1, -1), axis=-1)
    return o + params["b3"].reshape(())


if __name__ == "__main__":
    # Shapes consistent with MLP(input_dim=16, hidden_dims=[32, 32], dropout=0.1).
    # B is deliberately NOT a multiple of the block size (exercises lane padding)
    # and large enough to give a multi-step grid (2 steps of 256 rows).
    B, D = 300, 16
    HIDDEN = [32, 32]

    key = jax.random.PRNGKey(0)
    kx, kp = jax.random.split(key)
    x = jax.random.normal(kx, (B, D), dtype=jnp.float32)
    params = init_params(kp, D, HIDDEN)

    hidden_dtype = _default_hidden_dtype()
    out = mlp_forward(x, params, block_batch=1024, hidden_dtype=hidden_dtype)
    out = jax.block_until_ready(out)

    ref = mlp_reference(x, params, hidden_dtype=hidden_dtype)
    assert out.shape == (B,)
    assert jnp.allclose(out, ref, atol=5e-3, rtol=5e-3), "mismatch vs JAX reference"

    print("KERNEL_OK")
</pallas_src>

<mosaic_0001>
module attributes {stable_mosaic.version = 11 : i64} {
  func.func @_mlp_kernel(%arg0: i32, %arg1: memref<16x256xbf16, #tpu.memory_space<vmem>>, %arg2: memref<32x16xbf16, #tpu.memory_space<vmem>>, %arg3: memref<32x1xbf16, #tpu.memory_space<vmem>>, %arg4: memref<32x32xbf16, #tpu.memory_space<vmem>>, %arg5: memref<32x1xbf16, #tpu.memory_space<vmem>>, %arg6: memref<32x1xf32, #tpu.memory_space<vmem>>, %arg7: memref<1x1xf32, #tpu.memory_space<smem>>, %arg8: memref<1x256xf32, #tpu.memory_space<vmem>>) attributes {dimension_semantics = [#tpu.dimension_semantics<parallel>], iteration_bounds = array<i64: 2>, scalar_prefetch = 0 : i64, scratch_operands = 0 : i64, tpu.core_type = #tpu.core_type<tc>, window_params = [{transform_indices = @transform_0, window_bounds = array<i64: 16, 256>}, {pipeline_mode = #tpu.pipeline_mode<synchronous>, transform_indices = @transform_1, window_bounds = array<i64: 32, 16>}, {pipeline_mode = #tpu.pipeline_mode<synchronous>, transform_indices = @transform_2, window_bounds = array<i64: 32, 1>}, {pipeline_mode = #tpu.pipeline_mode<synchronous>, transform_indices = @transform_3, window_bounds = array<i64: 32, 32>}, {pipeline_mode = #tpu.pipeline_mode<synchronous>, transform_indices = @transform_4, window_bounds = array<i64: 32, 1>}, {pipeline_mode = #tpu.pipeline_mode<synchronous>, transform_indices = @transform_5, window_bounds = array<i64: 32, 1>}, {transform_indices = @transform_6, window_bounds = array<i64: 1, 1>}, {transform_indices = @transform_7, window_bounds = array<i64: 1, 256>}]} {
    %c0 = arith.constant 0 : index
    %c0_0 = arith.constant 0 : index
    %0 = vector.load %arg2[%c0, %c0_0] : memref<32x16xbf16, #tpu.memory_space<vmem>>, vector<32x16xbf16>
    %c0_1 = arith.constant 0 : index
    %c0_2 = arith.constant 0 : index
    %1 = vector.load %arg1[%c0_1, %c0_2] : memref<16x256xbf16, #tpu.memory_space<vmem>>, vector<16x256xbf16>
    %cst = arith.constant dense<0.000000e+00> : vector<32x256xf32>
    %2 = tpu.matmul %0, %1, %cst {dimension_numbers = #tpu.dot_dimension_numbers<[1], [0], [0], [1], [0, 0, 1, 1], [], []>} : vector<32x16xbf16>, vector<16x256xbf16>, vector<32x256xf32> -> vector<32x256xf32>
    %3 = arith.truncf %2 : vector<32x256xf32> to vector<32x256xbf16>
    %c0_3 = arith.constant 0 : index
    %c0_4 = arith.constant 0 : index
    %4 = vector.load %arg3[%c0_3, %c0_4] : memref<32x1xbf16, #tpu.memory_space<vmem>>, vector<32x1xbf16>
    %5 = vector.broadcast %4 : vector<32x1xbf16> to vector<32x256xbf16>
    %6 = arith.addf %3, %5 : vector<32x256xbf16>
    %cst_5 = arith.constant 0.000000e+00 : bf16
    %7 = vector.broadcast %cst_5 : bf16 to vector<32x256xbf16>
    %8 = arith.maximumf %6, %7 : vector<32x256xbf16>
    %c0_6 = arith.constant 0 : index
    %c0_7 = arith.constant 0 : index
    %9 = vector.load %arg4[%c0_6, %c0_7] : memref<32x32xbf16, #tpu.memory_space<vmem>>, vector<32x32xbf16>
    %cst_8 = arith.constant dense<0.000000e+00> : vector<32x256xf32>
    %10 = tpu.matmul %9, %8, %cst_8 {dimension_numbers = #tpu.dot_dimension_numbers<[1], [0], [0], [1], [0, 0, 1, 1], [], []>} : vector<32x32xbf16>, vector<32x256xbf16>, vector<32x256xf32> -> vector<32x256xf32>
    %11 = arith.truncf %10 : vector<32x256xf32> to vector<32x256xbf16>
    %c0_9 = arith.constant 0 : index
    %c0_10 = arith.constant 0 : index
    %12 = vector.load %arg5[%c0_9, %c0_10] : memref<32x1xbf16, #tpu.memory_space<vmem>>, vector<32x1xbf16>
    %13 = vector.broadcast %12 : vector<32x1xbf16> to vector<32x256xbf16>
    %14 = arith.addf %11, %13 : vector<32x256xbf16>
    %cst_11 = arith.constant 0.000000e+00 : bf16
    %15 = vector.broadcast %cst_11 : bf16 to vector<32x256xbf16>
    %16 = arith.maximumf %14, %15 : vector<32x256xbf16>
    %17 = arith.extf %16 : vector<32x256xbf16> to vector<32x256xf32>
    %c0_12 = arith.constant 0 : index
    %c0_13 = arith.constant 0 : index
    %18 = vector.load %arg6[%c0_12, %c0_13] : memref<32x1xf32, #tpu.memory_space<vmem>>, vector<32x1xf32>
    %19 = vector.broadcast %18 : vector<32x1xf32> to vector<32x256xf32>
    %20 = arith.mulf %17, %19 : vector<32x256xf32>
    %cst_14 = arith.constant dense<0.000000e+00> : vector<256xf32>
    %21 = vector.multi_reduction <add>, %20, %cst_14 [0] : vector<32x256xf32> to vector<256xf32>
    %22 = vector.shape_cast %21 : vector<256xf32> to vector<1x256xf32>
    %c0_15 = arith.constant 0 : index
    %c0_16 = arith.constant 0 : index
    %23 = memref.load %arg7[%c0_15, %c0_16] : memref<1x1xf32, #tpu.memory_space<smem>>
    %24 = vector.broadcast %23 : f32 to vector<1x256xf32>
    %25 = arith.addf %22, %24 : vector<1x256xf32>
    %c0_17 = arith.constant 0 : index
    %c0_18 = arith.constant 0 : index
    %26 = vector.load %arg8[%c0_17, %c0_18] : memref<1x256xf32, #tpu.memory_space<vmem>>, vector<1x256xf32>
    tpu.vector_store %arg8[%c0_17, %c0_18], %25 {strides = array<i32>} : memref<1x256xf32, #tpu.memory_space<vmem>>, vector<1x256xf32>,
    return
  }
  func.func @transform_0(%arg0: i32) -> (i32, i32) {
    %c0_i32 = arith.constant 0 : i32
    %c0_i32_0 = arith.constant 0 : i32
    return %c0_i32, %arg0 : i32, i32
  }
  func.func @transform_1(%arg0: i32) -> (i32, i32) {
    %c0_i32 = arith.constant 0 : i32
    %c0_i32_0 = arith.constant 0 : i32
    %c0_i32_1 = arith.constant 0 : i32
    return %c0_i32, %c0_i32_0 : i32, i32
  }
  func.func @transform_2(%arg0: i32) -> (i32, i32) {
    %c0_i32 = arith.constant 0 : i32
    %c0_i32_0 = arith.constant 0 : i32
    %c0_i32_1 = arith.constant 0 : i32
    return %c0_i32, %c0_i32_0 : i32, i32
  }
  func.func @transform_3(%arg0: i32) -> (i32, i32) {
    %c0_i32 = arith.constant 0 : i32
    %c0_i32_0 = arith.constant 0 : i32
    %c0_i32_1 = arith.constant 0 : i32
    return %c0_i32, %c0_i32_0 : i32, i32
  }
  func.func @transform_4(%arg0: i32) -> (i32, i32) {
    %c0_i32 = arith.constant 0 : i32
    %c0_i32_0 = arith.constant 0 : i32
    %c0_i32_1 = arith.constant 0 : i32
    return %c0_i32, %c0_i32_0 : i32, i32
  }
  func.func @transform_5(%arg0: i32) -> (i32, i32) {
    %c0_i32 = arith.constant 0 : i32
    %c0_i32_0 = arith.constant 0 : i32
    %c0_i32_1 = arith.constant 0 : i32
    return %c0_i32, %c0_i32_0 : i32, i32
  }
  func.func @transform_6(%arg0: i32) -> (i32, i32) {
    %c0_i32 = arith.constant 0 : i32
    %c0_i32_0 = arith.constant 0 : i32
    %c0_i32_1 = arith.constant 0 : i32
    return %c0_i32, %c0_i32_0 : i32, i32
  }
  func.func @transform_7(%arg0: i32) -> (i32, i32) {
    %c0_i32 = arith.constant 0 : i32
    %c0_i32_0 = arith.constant 0 : i32
    return %c0_i32, %arg0 : i32, i32
  }
}

</mosaic_0001>

<llo_original>
// kernel: tpu_custom_call.1
$region0: #{tpu_custom_call.1}
  #allocation0 [shape = 'u32[]', space=smem, size = 0x4, offset = 0x4, fixed_abs, tag = 'smem constant byte address 0x4 - core index']
  #allocation1 [shape = 'u32[72,128]{1,0:T(1,128)}', space=vmem, size = 0x9000, scoped, tag = 'internal scratch']
  #allocation2 [shape = 'f32[1,1]{1,0:T(1,128)S(6)}', space=smem, size = 0x200, scoped, tag = 'scoped memory for tpu_custom_call.1']
  %s0 = inlined_call_operand.vmem [shape: bf16[16,512], index: 0, kind: input, shape index: {}]
  %s1 = inlined_call_operand.vmem [shape: bf16[32,16], index: 1, kind: input, shape index: {}]
  %s2 = inlined_call_operand.vmem [shape: bf16[32,1], index: 2, kind: input, shape index: {}]
  %s3 = inlined_call_operand.vmem [shape: bf16[32,32], index: 3, kind: input, shape index: {}]
  %s4 = inlined_call_operand.vmem [shape: bf16[32,1], index: 4, kind: input, shape index: {}]
  %s5 = inlined_call_operand.vmem [shape: f32[32,1], index: 5, kind: input, shape index: {}]
  %s6 = inlined_call_operand.<no memory space> [shape: f32[1,1], index: 6, kind: input, shape index: {}]
  %s7 = inlined_call_operand.hbm [shape: f32[1,512], index: 7, kind: output, shape index: {}]
  %s8 = sld [smem:[#allocation0]]
  $region99: #{tpu_custom_call.1} parent=0
    _
  %s10 = ssub.s32 1, %s8
  %s11 = scalar_select 0, %s10, %s8
  %12 = sst [smem:[#allocation2]] %s6
  $region1: #{tpu_custom_call.1} parent=0
    #allocation3 [shape = 'u8[16384]{0}', space=vmem, size = 0x4000, scoped, tag = 'input window, operand 0']
    #allocation4 [shape = 'u8[2048]{0}', space=vmem, size = 0x800, scoped, tag = 'output window, operand 0']
    #allocation5 [shape = 's32[2]{0}', space=sflag, size = 0x8, scoped, tag = 'scoped memory for tpu_custom_call.1']
    %13 = vsyncpa [#allocation5], 0
    %s14 = scalar_lea.sflag [#allocation5], 1
    %15 = vsyncpa %s14, 0
    loop: start=0, step=1, limit=4
    $region2: #{tpu_custom_call.1} parent=1 // loop_pre_header
      _
    $region3: #{tpu_custom_call.1} parent=1 // loop_header
      %s17 = sphi 0, %s21
      %p18 = scmp.ge.s32.totalorder %s17, 4
      %s27 = sphi 0, %s29
      %s30 = sphi 0, %s27
      %s31 = sphi 0, %s30
      %s47 = sphi 0, %s31
      %s51 = sphi 0, %s51
      %s53 = sphi 0, %s51
      %s54 = sphi 0, %s53
      %s68 = sphi 0, %s54
      %s72 = sphi 0, %s72
      %s74 = sphi 0, %s72
      %s75 = sphi 0, %s74
      %s89 = sphi 0, %s75
      %s93 = sphi 0, %s93
      %s95 = sphi 0, %s93
      %s96 = sphi 0, %s95
      %s110 = sphi 0, %s96
      %s114 = sphi 0, %s114
      %s116 = sphi 0, %s114
      %s117 = sphi 0, %s116
      %s131 = sphi 0, %s117
      %s135 = sphi 0, %s135
      %s137 = sphi 0, %s135
      %s138 = sphi 0, %s137
      %s152 = sphi 0, %s138
      %s156 = sphi 0, %s156
      %s158 = sphi 0, %s156
      %s159 = sphi 0, %s158
      %s173 = sphi 0, %s159
      %s179 = sphi 0, %s181
      %s182 = sphi 0, %s179
      %s183 = sphi 0, %s182
      %s199 = sphi 0, %s183
    $region4: #{tpu_custom_call.1} parent=1 // loop_header_branch
      %20 = sbr.rel (%p18) target = $region8
    $region5: #{tpu_custom_call.1} parent=1 // loop_body
      %s22 = ssub.s32 %s17, 1
      %s23 = ssub.s32 %s17, 2
      %s24 = sadd.s32 %s17, 1
      %s25 = ssub.s32 %s17, %s24
      %p26 = scmp.eq.s32.totalorder %s25, 0
      %s28 = sadd.s32 %s27, 1
      %s29 = scalar_select %p26, %s27, %s28
      %p32 = pneg %p26
      %p33 = scmp.eq.s32.totalorder %s17, 1
      %p34 = por %p32, %p33
      %p35 = scmp.ne.s32.totalorder %s27, %s30
      %p36 = scmp.eq.s32.totalorder %s17, 0
      %p37 = por %p35, %p36
      %p38 = scmp.ne.s32.totalorder %s27, %s30
      %p39 = scmp.eq.s32.totalorder %s22, 1
      %p40 = por %p38, %p39
      %p41 = scmp.ne.s32.totalorder %s30, %s31
      %p42 = scmp.eq.s32.totalorder %s22, 0
      %p43 = por %p41, %p42
      %p44 = scmp.ne.s32.totalorder %s30, %s31
      %p45 = scmp.eq.s32.totalorder %s23, 1
      %p46 = por %p44, %p45
      %p48 = scmp.ne.s32.totalorder %s31, %s47
      %p49 = scmp.eq.s32.totalorder %s23, 0
      %p50 = por %p48, %p49
      %s52 = sadd.s32 %s51, 1
      %p55 = scmp.eq.s32.totalorder %s17, 1
      %p56 = scmp.ne.s32.totalorder %s51, %s53
      %p57 = scmp.eq.s32.totalorder %s17, 0
      %p58 = por %p56, %p57
      %p59 = scmp.ne.s32.totalorder %s51, %s53
      %p60 = scmp.eq.s32.totalorder %s22, 1
      %p61 = por %p59, %p60
      %p62 = scmp.ne.s32.totalorder %s53, %s54
      %p63 = scmp.eq.s32.totalorder %s22, 0
      %p64 = por %p62, %p63
      %p65 = scmp.ne.s32.totalorder %s53, %s54
      %p66 = scmp.eq.s32.totalorder %s23, 1
      %p67 = por %p65, %p66
      %p69 = scmp.ne.s32.totalorder %s54, %s68
      %p70 = scmp.eq.s32.totalorder %s23, 0
      %p71 = por %p69, %p70
      %s73 = sadd.s32 %s72, 1
      %p76 = scmp.eq.s32.totalorder %s17, 1
      %p77 = scmp.ne.s32.totalorder %s72, %s74
      %p78 = scmp.eq.s32.totalorder %s17, 0
      %p79 = por %p77, %p78
      %p80 = scmp.ne.s32.totalorder %s72, %s74
      %p81 = scmp.eq.s32.totalorder %s22, 1
      %p82 = por %p80, %p81
      %p83 = scmp.ne.s32.totalorder %s74, %s75
      %p84 = scmp.eq.s32.totalorder %s22, 0
      %p85 = por %p83, %p84
      %p86 = scmp.ne.s32.totalorder %s74, %s75
      %p87 = scmp.eq.s32.totalorder %s23, 1
      %p88 = por %p86, %p87
      %p90 = scmp.ne.s32.totalorder %s75, %s89
      %p91 = scmp.eq.s32.totalorder %s23, 0
      %p92 = por %p90, %p91
      %s94 = sadd.s32 %s93, 1
      %p97 = scmp.eq.s32.totalorder %s17, 1
      %p98 = scmp.ne.s32.totalorder %s93, %s95
      %p99 = scmp.eq.s32.totalorder %s17, 0
      %p100 = por %p98, %p99
      %p101 = scmp.ne.s32.totalorder %s93, %s95
      %p102 = scmp.eq.s32.totalorder %s22, 1
      %p103 = por %p101, %p102
      %p104 = scmp.ne.s32.totalorder %s95, %s96
      %p105 = scmp.eq.s32.totalorder %s22, 0
      %p106 = por %p104, %p105
      %p107 = scmp.ne.s32.totalorder %s95, %s96
      %p108 = scmp.eq.s32.totalorder %s23, 1
      %p109 = por %p107, %p108
      %p111 = scmp.ne.s32.totalorder %s96, %s110
      %p112 = scmp.eq.s32.totalorder %s23, 0
      %p113 = por %p111, %p112
      %s115 = sadd.s32 %s114, 1
      %p118 = scmp.eq.s32.totalorder %s17, 1
      %p119 = scmp.ne.s32.totalorder %s114, %s116
      %p120 = scmp.eq.s32.totalorder %s17, 0
      %p121 = por %p119, %p120
      %p122 = scmp.ne.s32.totalorder %s114, %s116
      %p123 = scmp.eq.s32.totalorder %s22, 1
      %p124 = por %p122, %p123
      %p125 = scmp.ne.s32.totalorder %s116, %s117
      %p126 = scmp.eq.s32.totalorder %s22, 0
      %p127 = por %p125, %p126
      %p128 = scmp.ne.s32.totalorder %s116, %s117
      %p129 = scmp.eq.s32.totalorder %s23, 1
      %p130 = por %p128, %p129
      %p132 = scmp.ne.s32.totalorder %s117, %s131
      %p133 = scmp.eq.s32.totalorder %s23, 0
      %p134 = por %p132, %p133
      %s136 = sadd.s32 %s135, 1
      %p139 = scmp.eq.s32.totalorder %s17, 1
      %p140 = scmp.ne.s32.totalorder %s135, %s137
      %p141 = scmp.eq.s32.totalorder %s17, 0
      %p142 = por %p140, %p141
      %p143 = scmp.ne.s32.totalorder %s135, %s137
      %p144 = scmp.eq.s32.totalorder %s22, 1
      %p145 = por %p143, %p144
      %p146 = scmp.ne.s32.totalorder %s137, %s138
      %p147 = scmp.eq.s32.totalorder %s22, 0
      %p148 = por %p146, %p147
      %p149 = scmp.ne.s32.totalorder %s137, %s138
      %p150 = scmp.eq.s32.totalorder %s23, 1
      %p151 = por %p149, %p150
      %p153 = scmp.ne.s32.totalorder %s138, %s152
      %p154 = scmp.eq.s32.totalorder %s23, 0
      %p155 = por %p153, %p154
      %s157 = sadd.s32 %s156, 1
      %p160 = scmp.eq.s32.totalorder %s17, 1
      %p161 = scmp.ne.s32.totalorder %s156, %s158
      %p162 = scmp.eq.s32.totalorder %s17, 0
      %p163 = por %p161, %p162
      %p164 = scmp.ne.s32.totalorder %s156, %s158
      %p165 = scmp.eq.s32.totalorder %s22, 1
      %p166 = por %p164, %p165
      %p167 = scmp.ne.s32.totalorder %s158, %s159
      %p168 = scmp.eq.s32.totalorder %s22, 0
      %p169 = por %p167, %p168
      %p170 = scmp.ne.s32.totalorder %s158, %s159
      %p171 = scmp.eq.s32.totalorder %s23, 1
      %p172 = por %p170, %p171
      %p174 = scmp.ne.s32.totalorder %s159, %s173
      %p175 = scmp.eq.s32.totalorder %s23, 0
      %p176 = por %p174, %p175
      %s177 = ssub.s32 %s17, %s24
      %p178 = scmp.eq.s32.totalorder %s177, 0
      %s180 = sadd.s32 %s179, 1
      %s181 = scalar_select %p178, %s179, %s180
      %p184 = pneg %p178
      %p185 = scmp.eq.s32.totalorder %s17, 1
      %p186 = por %p184, %p185
      %p187 = scmp.ne.s32.totalorder %s179, %s182
      %p188 = scmp.eq.s32.totalorder %s17, 0
      %p189 = por %p187, %p188
      %p190 = scmp.ne.s32.totalorder %s179, %s182
      %p191 = scmp.eq.s32.totalorder %s22, 1
      %p192 = por %p190, %p191
      %p193 = scmp.ne.s32.totalorder %s182, %s183
      %p194 = scmp.eq.s32.totalorder %s22, 0
      %p195 = por %p193, %p194
      %p196 = scmp.ne.s32.totalorder %s182, %s183
      %p197 = scmp.eq.s32.totalorder %s23, 1
      %p198 = por %p196, %p197
      %p200 = scmp.ne.s32.totalorder %s183, %s199
      %p201 = scmp.eq.s32.totalorder %s23, 0
      %p202 = por %p200, %p201
      %p203 = scmp.le.s32.totalorder 1, %s17
      %p204 = scmp.lt.s32.totalorder %s17, 3
      %p205 = pnand %p203, %p204
      %p206 = pneg %p205
      // Predicated region
      $region9: #{tpu_custom_call.1} parent=5 // pred_check
        _
      $region10: #{tpu_custom_call.1} parent=5 // pred_check_branch
        %208 = sbr.rel (%p205) target = $region12
      $region11: #{tpu_custom_call.1} parent=5 // pred_region
        %s209 = ssub.s32 %s17, 1
        // Predicated region
        $region13: #{tpu_custom_call.1} parent=11 // pred_check
          %p210 = pneg %p64
        $region14: #{tpu_custom_call.1} parent=11 // pred_check_branch
          %212 = sbr.rel (%p210) target = $region16
        $region15: #{tpu_custom_call.1} parent=11 // pred_region
          _
        $region16: #{tpu_custom_call.1} parent=11 // pred_fallthru
          _
        // Predicated region
        $region17: #{tpu_custom_call.1} parent=11 // pred_check
          %p213 = pneg %p85
        $region18: #{tpu_custom_call.1} parent=11 // pred_check_branch
          %215 = sbr.rel (%p213) target = $region20
        $region19: #{tpu_custom_call.1} parent=11 // pred_region
          _
        $region20: #{tpu_custom_call.1} parent=11 // pred_fallthru
          _
        // Predicated region
        $region21: #{tpu_custom_call.1} parent=11 // pred_check
          %p216 = pneg %p106
        $region22: #{tpu_custom_call.1} parent=11 // pred_check_branch
          %218 = sbr.rel (%p216) target = $region24
        $region23: #{tpu_custom_call.1} parent=11 // pred_region
          _
        $region24: #{tpu_custom_call.1} parent=11 // pred_fallthru
          _
        // Predicated region
        $region25: #{tpu_custom_call.1} parent=11 // pred_check
          %p219 = pneg %p127
        $region26: #{tpu_custom_call.1} parent=11 // pred_check_branch
          %221 = sbr.rel (%p219) target = $region28
        $region27: #{tpu_custom_call.1} parent=11 // pred_region
          _
        $region28: #{tpu_custom_call.1} parent=11 // pred_fallthru
          _
        // Predicated region
        $region29: #{tpu_custom_call.1} parent=11 // pred_check
          %p222 = pneg %p148
        $region30: #{tpu_custom_call.1} parent=11 // pred_check_branch
          %224 = sbr.rel (%p222) target = $region32
        $region31: #{tpu_custom_call.1} parent=11 // pred_region
          _
        $region32: #{tpu_custom_call.1} parent=11 // pred_fallthru
          _
        // Predicated region
        $region33: #{tpu_custom_call.1} parent=11 // pred_check
          %p225 = pneg %p169
        $region34: #{tpu_custom_call.1} parent=11 // pred_check_branch
          %227 = sbr.rel (%p225) target = $region36
        $region35: #{tpu_custom_call.1} parent=11 // pred_region
          _
        $region36: #{tpu_custom_call.1} parent=11 // pred_fallthru
          _
      $region12: #{tpu_custom_call.1} parent=5 // pred_fallthru
        _
      %p228 = scmp.lt.s32.totalorder %s17, 2
      // Predicated region
      $region37: #{tpu_custom_call.1} parent=5 // pred_check
        %p229 = pneg %p228
      $region38: #{tpu_custom_call.1} parent=5 // pred_check_branch
        %231 = sbr.rel (%p229) target = $region40
      $region39: #{tpu_custom_call.1} parent=5 // pred_region
        // Predicated region
        $region41: #{tpu_custom_call.1} parent=39 // pred_check
          %p232 = pneg %p37
        $region42: #{tpu_custom_call.1} parent=39 // pred_check_branch
          %234 = sbr.rel (%p232) target = $region44
        $region43: #{tpu_custom_call.1} parent=39 // pred_region
          %s235 = sand.u32 %s27, 1
          %s236 = sand.u32 %s27, 1
          %s237 = smul.addr %s236, 16
          %s238 = scalar_lea.vmem [#allocation3], %s237
          %s239 = smul.u32 2, %s17
          %s240 = smul.addr %s239, 4
          %s241 = scalar_lea.vmem %s0, %s240
          // Predicated region
          $region45: #{tpu_custom_call.1} parent=43 // pred_check
            _
          $region46: #{tpu_custom_call.1} parent=43 // pred_check_branch
            %243 = sbr.rel (0) target = $region48
          $region47: #{tpu_custom_call.1} parent=43 // pred_region
            // Predicated region
            $region49: #{tpu_custom_call.1} parent=47 // pred_check
              _
            $region50: #{tpu_custom_call.1} parent=47 // pred_check_branch
              %245 = sbr.rel (0) target = $region52
            $region51: #{tpu_custom_call.1} parent=47 // pred_region
              // Predicated region
              $region64: #{tpu_custom_call.1} parent=51 // pred_check
                _
              $region65: #{tpu_custom_call.1} parent=51 // pred_check_branch
                %263 = sbr.rel (0) target = $region67
              $region66: #{tpu_custom_call.1} parent=51 // pred_region
                loop: start=0, step=1, limit=1
                $region68: #{tpu_custom_call.1} parent=66 // loop_pre_header
                  _
                $region69: #{tpu_custom_call.1} parent=66 // loop_header
                  %s265 = sphi 0, %s269
                  %p266 = scmp.ge.s32.totalorder %s265, 1
                  %s270 = sphi %s241, %s241
                  %s271 = sphi %s238, %s238
                $region70: #{tpu_custom_call.1} parent=66 // loop_header_branch
                  %268 = sbr.rel (%p266) target = $region74
                $region71: #{tpu_custom_call.1} parent=66 // loop_body
                  %v272 = vld [vmem:[%s270] sm:$0xff]
                  %273 = vst [vmem:[%s271] sm:$0xff] %v272
                  %v274 = vld [vmem:[%s270 + $0x10] sm:$0xff]
                  %275 = vst [vmem:[%s271 + $0x8] sm:$0xff] %v274
                $region72: #{tpu_custom_call.1} parent=66 // loop_footer
                  %s269 = sadd.s32 1, %s265
                $region73: #{tpu_custom_call.1} parent=66 // loop_footer_branch
                  %264 = sbr.rel target = $region69
                $region74: #{tpu_custom_call.1} parent=66 // loop_exit
                  _
              $region67: #{tpu_custom_call.1} parent=51 // pred_fallthru
                _
              // Predicated region
              $region75: #{tpu_custom_call.1} parent=51 // pred_check
                _
              $region76: #{tpu_custom_call.1} parent=51 // pred_check_branch
                %277 = sbr.rel target = $region78
              $region77: #{tpu_custom_call.1} parent=51 // pred_region
                _
              $region78: #{tpu_custom_call.1} parent=51 // pred_fallthru
                _
            $region52: #{tpu_custom_call.1} parent=47 // pred_fallthru
              _
            // Predicated region
            $region53: #{tpu_custom_call.1} parent=47 // pred_check
              _
            $region54: #{tpu_custom_call.1} parent=47 // pred_check_branch
              %247 = sbr.rel target = $region56
            $region55: #{tpu_custom_call.1} parent=47 // pred_region
              %s249 = ssub.s32 256, 1
              loop: start=0, step=1, limit=1
              $region57: #{tpu_custom_call.1} parent=55 // loop_pre_header
                _
              $region58: #{tpu_custom_call.1} parent=55 // loop_header
                %s251 = sphi 0, %s255
                %p252 = scmp.ge.s32.totalorder %s251, 1
                %s256 = sphi %s241, %s241
                %s257 = sphi %s238, %s238
              $region59: #{tpu_custom_call.1} parent=55 // loop_header_branch
                %254 = sbr.rel (%p252) target = $region63
              $region60: #{tpu_custom_call.1} parent=55 // loop_body
                %v258 = vld [vmem:[%s256] sm:%s249]
                %259 = vst [vmem:[%s257] sm:%s249] %v258
                %v260 = vld [vmem:[%s256 + $0x10] sm:%s249]
                %261 = vst [vmem:[%s257 + $0x8] sm:%s249] %v260
              $region61: #{tpu_custom_call.1} parent=55 // loop_footer
                %s255 = sadd.s32 1, %s251
              $region62: #{tpu_custom_call.1} parent=55 // loop_footer_branch
                %250 = sbr.rel target = $region58
              $region63: #{tpu_custom_call.1} parent=55 // loop_exit
                _
            $region56: #{tpu_custom_call.1} parent=47 // pred_fallthru
              _
          $region48: #{tpu_custom_call.1} parent=43 // pred_fallthru
            _
          %278 = vnop
        $region44: #{tpu_custom_call.1} parent=39 // pred_fallthru
          _
      $region40: #{tpu_custom_call.1} parent=5 // pred_fallthru
        _
      %p279 = scmp.le.s32.totalorder 1, %s17
      %p280 = scmp.lt.s32.totalorder %s17, 3
      %p281 = pnand %p279, %p280
      %p282 = pneg %p281
      // Predicated region
      $region79: #{tpu_custom_call.1} parent=5 // pred_check
        _
      $region80: #{tpu_custom_call.1} parent=5 // pred_check_branch
        %284 = sbr.rel (%p281) target = $region82
      $region81: #{tpu_custom_call.1} parent=5 // pred_region
        %s285 = ssub.s32 %s17, 1
        %s286 = sand.u32 %s30, 1
        %s287 = sand.u32 %s30, 1
        %s288 = smul.addr %s287, 16
        %s289 = scalar_lea.vmem [#allocation3], %s288
        // Predicated region
        $region83: #{tpu_custom_call.1} parent=81 // pred_check
          %p290 = pneg %p43
        $region84: #{tpu_custom_call.1} parent=81 // pred_check_branch
          %292 = sbr.rel (%p290) target = $region86
        $region85: #{tpu_custom_call.1} parent=81 // pred_region
          _
        $region86: #{tpu_custom_call.1} parent=81 // pred_fallthru
          _
        %s293 = sand.u32 %s30, 1
        %s294 = sand.u32 %s30, 1
        %s295 = smul.addr %s294, 16
        %s296 = scalar_lea.vmem [#allocation3], %s295
        %p297 = pneg %p43
        %p298 = pneg %p40
        %p299 = pneg %p64
        %p300 = pneg %p61
        %p301 = pneg %p85
        %p302 = pneg %p82
        %p303 = pneg %p106
        %p304 = pneg %p103
        %p305 = pneg %p127
        %p306 = pneg %p124
        %p307 = pneg %p148
        %p308 = pneg %p145
        %p309 = pneg %p169
        %p310 = pneg %p166
        %p311 = pneg %p195
        %p312 = pneg %p192
        %s313 = sand.u32 %s182, 1
        %s314 = scalar_lea.sflag [#allocation5], %s313
        %s315 = sand.u32 %s182, 1
        %s316 = smul.addr %s315, 2
        %s317 = scalar_lea.vmem [#allocation4], %s316
        %s318 = smul.u32 2, %s22
        %s319 = smul.u32 2, %s22
        %v321 = vld [vmem:[%s1] sm:$0xf]
        %v322 = vld [vmem:[%s1 + $0x4] sm:$0xf]
        %v323 = vld [vmem:[%s1 + $0x8] sm:$0xf]
        %v324 = vld [vmem:[%s1 + $0xc] sm:$0xf]
        %v325 = vld [vmem:[%s289] sm:$0xff]
        %v326 = vld [vmem:[%s289 + $0x8] sm:$0xff]
        %v331 = vunpack.c.l.b16 %v321
        %v332 = vunpack.c.l.b16 %v322
        %v333 = vunpack.c.l.b16 %v323
        %v334 = vunpack.c.l.b16 %v324
        %v335 = vpack.c.b16 %v332, %v331
        %v336 = vpack.c.b16 %v334, %v333
        %v339 = vunpack.c.l.b16 %v325
        %v340 = vunpack.c.h.b16 %v325
        %v341 = vunpack.c.l.b16 %v326
        %v342 = vunpack.c.h.b16 %v326
        %v343 = vpack.c.b16 %v341, %v339
        %v344 = vpack.c.b16 %v342, %v340
        %vm347 = vcmask 130048
        %v349 = vsel %vm347, %v335, 0
        %v352 = vsel %vm347, %v336, 0
        %354 = vmatpush.bf16.msra.mxu0 0
        %355 = vmatpush.bf16.msra.mxu0 0
        %356 = vmatpush.bf16.msra.mxu0 0
        %357 = vmatpush.bf16.msra.mxu0 0
        %358 = vmatpush.bf16.msra.mxu0 0
        %359 = vmatpush.bf16.msra.mxu0 0
        %360 = vmatpush.bf16.msra.mxu0 0
        %361 = vmatpush.bf16.msra.mxu0 %v343
        %362 = vmatmul.bf16.gmra.mxu0 %v349
        %v363 = vpop.f32.mrf.mxu0
        %v364 = vadd.f32 0.0, %v363
        %v365 = vpop.f32.mrf.mxu0
        %v366 = vadd.f32 0.0, %v365
        %367 = vmatmul.bf16.gmra.mxu0 %v352
        %v368 = vpop.f32.mrf.mxu0
        %v369 = vadd.f32 0.0, %v368
        %v370 = vpop.f32.mrf.mxu0
        %v371 = vadd.f32 0.0, %v370
        %372 = vdwg.mxu0
        %373 = vmatpush.bf16.msra.mxu0 0
        %374 = vmatpush.bf16.msra.mxu0 0
        %375 = vmatpush.bf16.msra.mxu0 0
        %376 = vmatpush.bf16.msra.mxu0 0
        %377 = vmatpush.bf16.msra.mxu0 0
        %378 = vmatpush.bf16.msra.mxu0 0
        %379 = vmatpush.bf16.msra.mxu0 0
        %380 = vmatpush.bf16.msra.mxu0 %v344
        %381 = vmatmul.bf16.gmra.mxu0 %v349
        %v382 = vpop.f32.mrf.mxu0
        %v383 = vadd.f32 0.0, %v382
        %v384 = vpop.f32.mrf.mxu0
        %v385 = vadd.f32 0.0, %v384
        %386 = vmatmul.bf16.gmra.mxu0 %v352
        %v387 = vpop.f32.mrf.mxu0
        %v388 = vadd.f32 0.0, %v387
        %v389 = vpop.f32.mrf.mxu0
        %v390 = vadd.f32 0.0, %v389
        %391 = vdwg.mxu0
        %v392 = vpack.c.bf16 %v383, %v364
        %v393 = vpack.c.bf16 %v385, %v366
        %v394 = vpack.c.bf16 %v388, %v369
        %v395 = vpack.c.bf16 %v390, %v371
        %v396 = vld [vmem:[%s2] sm:$0xf]
        %v397 = vld [vmem:[%s2 + $0x4] sm:$0xf]
        %v398 = vld [vmem:[%s2 + $0x8] sm:$0xf]
        %v399 = vld [vmem:[%s2 + $0xc] sm:$0xf]
        %401 = vset.pattern.permute.xlu0 0
        %402 = vperm.xlu0 %401, %v396
        %v403 = vpop.permute.xlu0 %402
        %v406 = vunpack.c.l.s4 839922192
        %v407 = vunpack.c.0.s8 %v406
        %v408 = vperm.slane %v403, %v407
        %410 = vset.pattern.permute.xlu0 0
        %411 = vperm.xlu0 %410, %v397
        %v412 = vpop.permute.xlu0 %411
        %v415 = vunpack.c.l.s4 839922192
        %v416 = vunpack.c.0.s8 %v415
        %v417 = vperm.slane %v412, %v416
        %419 = vset.pattern.permute.xlu0 0
        %420 = vperm.xlu0 %419, %v398
        %v421 = vpop.permute.xlu0 %420
        %v424 = vunpack.c.l.s4 839922192
        %v425 = vunpack.c.0.s8 %v424
        %v426 = vperm.slane %v421, %v425
        %428 = vset.pattern.permute.xlu0 0
        %429 = vperm.xlu0 %428, %v399
        %v430 = vpop.permute.xlu0 %429
        %v433 = vunpack.c.l.s4 839922192
        %v434 = vunpack.c.0.s8 %v433
        %v435 = vperm.slane %v430, %v434
        %v436 = vunpack.c.l.bf16 %v392
        %v437 = vunpack.c.h.bf16 %v392
        %v438 = vunpack.c.l.bf16 %v393
        %v439 = vunpack.c.h.bf16 %v393
        %v440 = vunpack.c.l.bf16 %v394
        %v441 = vunpack.c.h.bf16 %v394
        %v442 = vunpack.c.l.bf16 %v395
        %v443 = vunpack.c.h.bf16 %v395
        %v444 = vunpack.c.l.bf16 %v408
        %v445 = vunpack.c.l.bf16 %v417
        %v446 = vunpack.c.l.bf16 %v426
        %v447 = vunpack.c.l.bf16 %v435
        %v448 = vadd.f32 %v436, %v444
        %v449 = vadd.f32 %v437, %v444
        %v450 = vadd.f32 %v438, %v445
        %v451 = vadd.f32 %v439, %v445
        %v452 = vadd.f32 %v440, %v446
        %v453 = vadd.f32 %v441, %v446
        %v454 = vadd.f32 %v442, %v447
        %v455 = vadd.f32 %v443, %v447
        %v456 = vpack.c.bf16 %v449, %v448
        %v457 = vpack.c.bf16 %v451, %v450
        %v458 = vpack.c.bf16 %v453, %v452
        %v459 = vpack.c.bf16 %v455, %v454
        %v460 = vunpack.c.l.bf16 %v456
        %v461 = vunpack.c.h.bf16 %v456
        %v462 = vunpack.c.l.bf16 %v457
        %v463 = vunpack.c.h.bf16 %v457
        %v464 = vunpack.c.l.bf16 %v458
        %v465 = vunpack.c.h.bf16 %v458
        %v466 = vunpack.c.l.bf16 %v459
        %v467 = vunpack.c.h.bf16 %v459
        %v468 = vmax.f32 %v460, 0.0
        %v469 = vmax.f32 %v461, 0.0
        %v470 = vmax.f32 %v462, 0.0
        %v471 = vmax.f32 %v463, 0.0
        %v472 = vmax.f32 %v464, 0.0
        %v473 = vmax.f32 %v465, 0.0
        %v474 = vmax.f32 %v466, 0.0
        %v475 = vmax.f32 %v467, 0.0
        %v476 = vpack.c.bf16 %v470, %v468
        %v477 = vpack.c.bf16 %v471, %v469
        %v478 = vpack.c.bf16 %v474, %v472
        %v479 = vpack.c.bf16 %v475, %v473
        %v480 = vld [vmem:[%s3] sm:$0xf]
        %v481 = vld [vmem:[%s3 + $0x4] sm:$0xf]
        %v482 = vld [vmem:[%s3 + $0x8] sm:$0xf]
        %v483 = vld [vmem:[%s3 + $0xc] sm:$0xf]
        %v488 = vunpack.c.l.b16 %v480
        %v489 = vunpack.c.l.b16 %v481
        %v490 = vunpack.c.l.b16 %v482
        %v491 = vunpack.c.l.b16 %v483
        %v492 = vpack.c.b16 %v489, %v488
        %v493 = vpack.c.b16 %v491, %v490
        %vm494 = vcmask 261120
        %v496 = vsel %vm494, %v492, 0
        %v499 = vsel %vm494, %v493, 0
        %501 = vmatpush.bf16.msra.mxu0 0
        %502 = vmatpush.bf16.msra.mxu0 0
        %503 = vmatpush.bf16.msra.mxu0 0
        %504 = vmatpush.bf16.msra.mxu0 0
        %505 = vmatpush.bf16.msra.mxu0 0
        %506 = vmatpush.bf16.msra.mxu0 0
        %507 = vmatpush.bf16.msra.mxu0 %v478
        %508 = vmatpush.bf16.msra.mxu0 %v476
        %509 = vmatmul.bf16.gmra.mxu0 %v496
        %v510 = vpop.f32.mrf.mxu0
        %v511 = vadd.f32 0.0, %v510
        %v512 = vpop.f32.mrf.mxu0
        %v513 = vadd.f32 0.0, %v512
        %514 = vmatmul.bf16.gmra.mxu0 %v499
        %v515 = vpop.f32.mrf.mxu0
        %v516 = vadd.f32 0.0, %v515
        %v517 = vpop.f32.mrf.mxu0
        %v518 = vadd.f32 0.0, %v517
        %519 = vdwg.mxu0
        %520 = vmatpush.bf16.msra.mxu0 0
        %521 = vmatpush.bf16.msra.mxu0 0
        %522 = vmatpush.bf16.msra.mxu0 0
        %523 = vmatpush.bf16.msra.mxu0 0
        %524 = vmatpush.bf16.msra.mxu0 0
        %525 = vmatpush.bf16.msra.mxu0 0
        %526 = vmatpush.bf16.msra.mxu0 %v479
        %527 = vmatpush.bf16.msra.mxu0 %v477
        %528 = vmatmul.bf16.gmra.mxu0 %v496
        %v529 = vpop.f32.mrf.mxu0
        %v530 = vadd.f32 0.0, %v529
        %v531 = vpop.f32.mrf.mxu0
        %v532 = vadd.f32 0.0, %v531
        %533 = vmatmul.bf16.gmra.mxu0 %v499
        %v534 = vpop.f32.mrf.mxu0
        %v535 = vadd.f32 0.0, %v534
        %v536 = vpop.f32.mrf.mxu0
        %v537 = vadd.f32 0.0, %v536
        %538 = vdwg.mxu0
        %v539 = vpack.c.bf16 %v530, %v511
        %v540 = vpack.c.bf16 %v532, %v513
        %v541 = vpack.c.bf16 %v535, %v516
        %v542 = vpack.c.bf16 %v537, %v518
        %v543 = vld [vmem:[%s4] sm:$0xf]
        %v544 = vld [vmem:[%s4 + $0x4] sm:$0xf]
        %v545 = vld [vmem:[%s4 + $0x8] sm:$0xf]
        %v546 = vld [vmem:[%s4 + $0xc] sm:$0xf]
        %548 = vset.pattern.permute.xlu0 0
        %549 = vperm.xlu0 %548, %v543
        %v550 = vpop.permute.xlu0 %549
        %v553 = vunpack.c.l.s4 839922192
        %v554 = vunpack.c.0.s8 %v553
        %v555 = vperm.slane %v550, %v554
        %557 = vset.pattern.permute.xlu0 0
        %558 = vperm.xlu0 %557, %v544
        %v559 = vpop.permute.xlu0 %558
        %v562 = vunpack.c.l.s4 839922192
        %v563 = vunpack.c.0.s8 %v562
        %v564 = vperm.slane %v559, %v563
        %566 = vset.pattern.permute.xlu0 0
        %567 = vperm.xlu0 %566, %v545
        %v568 = vpop.permute.xlu0 %567
        %v571 = vunpack.c.l.s4 839922192
        %v572 = vunpack.c.0.s8 %v571
        %v573 = vperm.slane %v568, %v572
        %575 = vset.pattern.permute.xlu0 0
        %576 = vperm.xlu0 %575, %v546
        %v577 = vpop.permute.xlu0 %576
        %v580 = vunpack.c.l.s4 839922192
        %v581 = vunpack.c.0.s8 %v580
        %v582 = vperm.slane %v577, %v581
        %v583 = vunpack.c.l.bf16 %v539
        %v584 = vunpack.c.h.bf16 %v539
        %v585 = vunpack.c.l.bf16 %v540
        %v586 = vunpack.c.h.bf16 %v540
        %v587 = vunpack.c.l.bf16 %v541
        %v588 = vunpack.c.h.bf16 %v541
        %v589 = vunpack.c.l.bf16 %v542
        %v590 = vunpack.c.h.bf16 %v542
        %v591 = vunpack.c.l.bf16 %v555
        %v592 = vunpack.c.l.bf16 %v564
        %v593 = vunpack.c.l.bf16 %v573
        %v594 = vunpack.c.l.bf16 %v582
        %v595 = vadd.f32 %v583, %v591
        %v596 = vadd.f32 %v584, %v591
        %v597 = vadd.f32 %v585, %v592
        %v598 = vadd.f32 %v586, %v592
        %v599 = vadd.f32 %v587, %v593
        %v600 = vadd.f32 %v588, %v593
        %v601 = vadd.f32 %v589, %v594
        %v602 = vadd.f32 %v590, %v594
        %v603 = vpack.c.bf16 %v596, %v595
        %v604 = vpack.c.bf16 %v598, %v597
        %v605 = vpack.c.bf16 %v600, %v599
        %v606 = vpack.c.bf16 %v602, %v601
        %v607 = vunpack.c.l.bf16 %v603
        %v608 = vunpack.c.h.bf16 %v603
        %v609 = vunpack.c.l.bf16 %v604
        %v610 = vunpack.c.h.bf16 %v604
        %v611 = vunpack.c.l.bf16 %v605
        %v612 = vunpack.c.h.bf16 %v605
        %v613 = vunpack.c.l.bf16 %v606
        %v614 = vunpack.c.h.bf16 %v606
        %v615 = vmax.f32 %v607, 0.0
        %v616 = vmax.f32 %v608, 0.0
        %v617 = vmax.f32 %v609, 0.0
        %v618 = vmax.f32 %v610, 0.0
        %v619 = vmax.f32 %v611, 0.0
        %v620 = vmax.f32 %v612, 0.0
        %v621 = vmax.f32 %v613, 0.0
        %v622 = vmax.f32 %v614, 0.0
        %v623 = vpack.c.bf16 %v616, %v615
        %v624 = vpack.c.bf16 %v618, %v617
        %v625 = vpack.c.bf16 %v620, %v619
        %v626 = vpack.c.bf16 %v622, %v621
        %v627 = vunpack.c.l.bf16 %v623
        %v628 = vunpack.c.h.bf16 %v623
        %v629 = vunpack.c.l.bf16 %v624
        %v630 = vunpack.c.h.bf16 %v624
        %v631 = vunpack.c.l.bf16 %v625
        %v632 = vunpack.c.h.bf16 %v625
        %v633 = vunpack.c.l.bf16 %v626
        %v634 = vunpack.c.h.bf16 %v626
        %v635 = vld [vmem:[%s5] sm:$0xff]
        %v636 = vld [vmem:[%s5 + $0x8] sm:$0xff]
        %v637 = vld [vmem:[%s5 + $0x10] sm:$0xff]
        %v638 = vld [vmem:[%s5 + $0x18] sm:$0xff]
        %640 = vset.pattern.permute.xlu0 0
        %641 = vperm.xlu0 %640, %v635
        %v642 = vpop.permute.xlu0 %641
        %645 = vset.pattern.permute.xlu0 0
        %646 = vperm.xlu0 %645, %v636
        %v647 = vpop.permute.xlu0 %646
        %650 = vset.pattern.permute.xlu0 0
        %651 = vperm.xlu0 %650, %v637
        %v652 = vpop.permute.xlu0 %651
        %655 = vset.pattern.permute.xlu0 0
        %656 = vperm.xlu0 %655, %v638
        %v657 = vpop.permute.xlu0 %656
        %v659 = vmul.f32 %v627, %v642
        %v660 = vmul.f32 %v628, %v642
        %v661 = vmul.f32 %v629, %v647
        %v662 = vmul.f32 %v630, %v647
        %v663 = vmul.f32 %v631, %v652
        %v664 = vmul.f32 %v632, %v652
        %v665 = vmul.f32 %v633, %v657
        %v666 = vmul.f32 %v634, %v657
        %v667 = vadd.f32 %v659, %v661
        %v668 = vadd.f32 %v667, %v663
        %v669 = vadd.f32 %v668, %v665
        %v670 = vrot.slane %v669, 4
        %v671 = vadd.f32 %v669, %v670
        %v672 = vrot.slane %v671, 2
        %v673 = vadd.f32 %v671, %v672
        %v674 = vrot.slane %v673, 1
        %v675 = vadd.f32 %v673, %v674
        %v676 = vadd.f32 %v660, %v662
        %v677 = vadd.f32 %v676, %v664
        %v678 = vadd.f32 %v677, %v666
        %v679 = vrot.slane %v678, 4
        %v680 = vadd.f32 %v678, %v679
        %v681 = vrot.slane %v680, 2
        %v682 = vadd.f32 %v680, %v681
        %v683 = vrot.slane %v682, 1
        %v684 = vadd.f32 %v682, %v683
        %s685 = sld [smem:[#allocation2]]
        %v686 = vstv %s685
        %v687 = vadd.f32 %v675, %v686
        %v688 = vadd.f32 %v684, %v686
        %v691 = vrot.slane %v688, 7
        %vm692 = vcmask 1040384
        %v693 = vsel %vm692, %v687, %v691
        %v695 = vlaneseq
        %vm696 = vcmp.ge.s32.totalorder %v695, 0
        %vm697 = vcmp.lt.s32.totalorder %v695, 256
        %vm698 = vmand %vm696, %vm697
        %699 = vst.msk [vmem:[%s317] sm:$0x3] %vm698, %v693
        %s700 = sand.u32 %s182, 1
        %s701 = scalar_lea.sflag [#allocation5], %s700
        %s702 = sand.u32 %s182, 1
        %s703 = smul.addr %s702, 2
        %s704 = scalar_lea.vmem [#allocation4], %s703
        // Predicated region
        $region87: #{tpu_custom_call.1} parent=81 // pred_check
          %p705 = pneg %p192
        $region88: #{tpu_custom_call.1} parent=81 // pred_check_branch
          %707 = sbr.rel (%p705) target = $region90
        $region89: #{tpu_custom_call.1} parent=81 // pred_region
          %s708 = smul.u32 2, %s22
          %710 = vsyncadd %s701, 0
          %s711 = scalar_lea.hbm %s7, %s708
          %s713 = sshll.u32 %s704, 4
          %s714 = int_to_ptr.vmem [resolvable:$true] %s713
          %s715 = sshll.u32 %s711, 4
          %s716 = int_to_ptr.hbm [resolvable:$true] %s715
          %718 = dma.vmem_to_hbm [thread:$0]  %s714, 32, %s716, %s701
        $region90: #{tpu_custom_call.1} parent=81 // pred_fallthru
          _
      $region82: #{tpu_custom_call.1} parent=5 // pred_fallthru
        _
      %p719 = scmp.le.s32.totalorder 2, %s17
      // Predicated region
      $region91: #{tpu_custom_call.1} parent=5 // pred_check
        %p720 = pneg %p719
      $region92: #{tpu_custom_call.1} parent=5 // pred_check_branch
        %722 = sbr.rel (%p720) target = $region94
      $region93: #{tpu_custom_call.1} parent=5 // pred_region
        %s723 = ssub.s32 %s17, 2
        // Predicated region
        $region95: #{tpu_custom_call.1} parent=93 // pred_check
          %p724 = pneg %p198
        $region96: #{tpu_custom_call.1} parent=93 // pred_check_branch
          %726 = sbr.rel (%p724) target = $region98
        $region97: #{tpu_custom_call.1} parent=93 // pred_region
          %s727 = sand.u32 %s183, 1
          %s728 = scalar_lea.sflag [#allocation5], %s727
          %s729 = sand.u32 %s183, 1
          %s730 = smul.addr %s729, 2
          %s731 = scalar_lea.vmem [#allocation4], %s730
          %733 = dma.done %s728, 32
        $region98: #{tpu_custom_call.1} parent=93 // pred_fallthru
          _
      $region94: #{tpu_custom_call.1} parent=5 // pred_fallthru
        _
    $region6: #{tpu_custom_call.1} parent=1 // loop_footer
      %s21 = sadd.s32 1, %s17
    $region7: #{tpu_custom_call.1} parent=1 // loop_footer_branch
      %16 = sbr.rel target = $region3
    $region8: #{tpu_custom_call.1} parent=1 // loop_exit
      _
    %734 = vsyncpa [#allocation5], 1
    %s735 = scalar_lea.sflag [#allocation5], 1
    %736 = vsyncpa %s735, 1

</llo_original>
